<compile_context>
chip_gen: v7x
topology: tpu7x:2x2x1
jax: 0.10.0
libtpu: 0.0.40
codegen_flags: <defaults>
</compile_context>

<pallas_src>
import functools
import math

import jax
import jax.numpy as jnp
from jax.experimental import pallas as pl
from jax.experimental.pallas import tpu as pltpu


def _tpu_vmem_bytes():
    """Physical VMEM per core, with a v7x-safe fallback."""
    try:
        return int(pltpu.get_tpu_info().vmem_capacity_bytes)
    except Exception:
        return 64 * 1024 * 1024


def _num_tensorcores():
    """TensorCores per chip (2 on v7x, 1 on v5e/v6e); conservative fallback 1."""
    try:
        kind = jax.devices()[0].device_kind.lower()
    except Exception:
        kind = ""
    return 2 if ("v7" in kind or "7x" in kind) else 1


def _dice_partial_kernel(x_ref, y_ref, o_ref, inter_acc, card_acc, *,
                         num_classes, rows, tiles_per_chunk, valid_s,
                         needs_mask, labels_mode):
    """One (batch, chunk, spatial-tile) grid step.

    x_ref : [C, rows, 128] logits block (batch & chunk dims squeezed).
    y_ref : [C, rows, 128] dense target block, or [rows, 128] int32 labels.
    o_ref : [2, C] output (row 0 = intersection, row 1 = cardinality),
            written only on the last tile of the chunk.
    inter_acc, card_acc : [C, 128] f32 VMEM lane-partial accumulators.
    """
    t = pl.program_id(2)
    chunk = pl.program_id(1)

    @pl.when(t == 0)
    def _init():
        inter_acc[...] = jnp.zeros_like(inter_acc)
        card_acc[...] = jnp.zeros_like(card_acc)

    tile_idx = chunk * tiles_per_chunk + t
    row0 = tile_idx * rows                 # first spatial row of this tile
    tile_start = row0 * 128                # first flattened spatial index
    tile_span = rows * 128

    def accumulate(apply_mask):
        x = x_ref[...].astype(jnp.float32)             # (C, rows, 128)
        # Numerically stable channel softmax: element-wise across the C slabs.
        m = jnp.max(x, axis=0, keepdims=True)
        e = jnp.exp(x - m)
        denom = jnp.sum(e, axis=0, keepdims=True)      # >= 1 after max shift
        p = e * pl.reciprocal(denom, approx=True)      # EUP slot (free)

        if labels_mode:
            lbl = y_ref[...]                           # (rows, 128) int32
            # Padded lanes carry label == num_classes -> all-zero one-hot.
            y = jnp.stack([(lbl == c) for c in range(num_classes)],
                          axis=0).astype(jnp.float32)  # (C, rows, 128)
        else:
            y = y_ref[...].astype(jnp.float32)         # (C, rows, 128), 0-pad

        if apply_mask:
            ri = jax.lax.broadcasted_iota(jnp.int32, (rows, 128), 0)
            li = jax.lax.broadcasted_iota(jnp.int32, (rows, 128), 1)
            pos = (row0 + ri) * 128 + li
            p = jnp.where((pos < valid_s)[None, :, :], p, 0.0)

        # Sublane-only reduce per tile; the cross-lane reduce is deferred to
        # the finalize step.
        inter_acc[...] += jnp.sum(p * y, axis=1)       # (C, 128)
        card_acc[...] += jnp.sum(p + y, axis=1)        # (C, 128)

    if needs_mask:
        is_interior = tile_start + tile_span <= valid_s
        is_boundary = jnp.logical_and(tile_start < valid_s,
                                      jnp.logical_not(is_interior))
        pl.when(is_interior)(lambda: accumulate(False))
        pl.when(is_boundary)(lambda: accumulate(True))
        # Fully padded tiles (tile_start >= valid_s) skip compute entirely.
    else:
        accumulate(False)

    @pl.when(t == pl.num_programs(2) - 1)
    def _finalize():
        o_ref[0, :] = jnp.sum(inter_acc[...], axis=-1)
        o_ref[1, :] = jnp.sum(card_acc[...], axis=-1)


def _dice_partials(x_flat, y_flat, labels_mode, *, max_tile_lanes=None):
    """x_flat: [B, C, S]; y_flat: [B, C, S] dense or [B, S] int labels.

    Returns (intersection[B, C], cardinality[B, C]) in float32.
    """
    B, C, S = x_flat.shape
    x_item = jnp.dtype(x_flat.dtype).itemsize
    row_align = max(8, 32 // max(1, x_item))      # 8 f32 / 16 bf16 / 32 int8
    n_rows = pl.cdiv(S, 128)
    num_tc = _num_tensorcores()

    vmem_phys = _tpu_vmem_bytes()
    vmem_limit = min(vmem_phys * 3 // 4, 112 * 1024 * 1024)
    budget = vmem_limit // 2                      # headroom for compiler temps

    # Bytes per 128-lane spatial row: double-buffered input blocks plus the
    # in-kernel f32 intermediates (x upcast, e, p, p*y, p+y, slack).
    row_bytes = C * 128 * (2 * x_item + 6 * 4)
    if labels_mode:
        row_bytes += 128 * 2 * 4                  # int32 label stream
    else:
        row_bytes += C * 128 * 2 * jnp.dtype(y_flat.dtype).itemsize

    cap_rows = 64 if num_tc >= 2 else 128         # 8K lanes v7x / 16K others
    rows = min(cap_rows, max(row_align, budget // row_bytes))
    if max_tile_lanes is not None:
        rows = min(rows, max(1, max_tile_lanes // 128))
    rows = max(row_align, (rows // row_align) * row_align)
    rows = min(rows, ((n_rows + row_align - 1) // row_align) * row_align)

    n_tiles = pl.cdiv(n_rows, rows)
    # Extra parallel grid extent only where a second TensorCore exists (v7x)
    # and the batch alone cannot feed it; partials are summed in JAX after.
    nchunk = 2 if (B < num_tc and n_tiles >= 2) else 1
    tiles_per_chunk = pl.cdiv(n_tiles, nchunk)
    r_total = nchunk * tiles_per_chunk * rows
    s_pad = r_total * 128
    needs_mask = s_pad != S

    if s_pad != S:
        pad = s_pad - S
        x_flat = jnp.pad(x_flat, ((0, 0), (0, 0), (0, pad)))
        if labels_mode:
            # Out-of-range label -> zero one-hot inside the kernel.
            y_flat = jnp.pad(y_flat, ((0, 0), (0, pad)), constant_values=C)
        else:
            y_flat = jnp.pad(y_flat, ((0, 0), (0, 0), (0, pad)))

    x_4d = x_flat.reshape(B, C, r_total, 128)
    x_spec = pl.BlockSpec(
        (pl.Squeezed(), C, rows, 128),
        lambda b, c, t: (b, 0, c * tiles_per_chunk + t, 0))
    if labels_mode:
        y_nd = y_flat.astype(jnp.int32).reshape(B, r_total, 128)
        y_spec = pl.BlockSpec(
            (pl.Squeezed(), rows, 128),
            lambda b, c, t: (b, c * tiles_per_chunk + t, 0))
    else:
        y_nd = y_flat.reshape(B, C, r_total, 128)
        y_spec = pl.BlockSpec(
            (pl.Squeezed(), C, rows, 128),
            lambda b, c, t: (b, 0, c * tiles_per_chunk + t, 0))
    out_spec = pl.BlockSpec(
        (pl.Squeezed(), pl.Squeezed(), 2, C),
        lambda b, c, t: (b, c, 0, 0))     # same block across t -> accumulator

    kernel = functools.partial(
        _dice_partial_kernel,
        num_classes=C, rows=rows, tiles_per_chunk=tiles_per_chunk,
        valid_s=S, needs_mask=needs_mask, labels_mode=labels_mode)

    out = pl.pallas_call(
        kernel,
        out_shape=jax.ShapeDtypeStruct((B, nchunk, 2, C), jnp.float32),
        grid_spec=pltpu.PrefetchScalarGridSpec(
            num_scalar_prefetch=0,
            grid=(B, nchunk, tiles_per_chunk),
            in_specs=[x_spec, y_spec],
            out_specs=out_spec,
            scratch_shapes=[pltpu.VMEM((C, 128), jnp.float32),
                            pltpu.VMEM((C, 128), jnp.float32)],
        ),
        compiler_params=pltpu.CompilerParams(
            dimension_semantics=("parallel", "parallel", "arbitrary"),
            vmem_limit_bytes=vmem_limit,
        ),
    )(x_4d, y_nd)

    out = jnp.sum(out, axis=1)            # sum chunk partials -> [B, 2, C]
    return out[:, 0, :], out[:, 1, :]


def soft_dice_loss(x, y, average="micro", epsilon=0.0, *, max_tile_lanes=None):
    """JAX/Pallas equivalent of SoftDiceLoss(average, epsilon)(x, y).

    x: [B, C, *spatial] logits.  y: either a dense (one-hot / soft) target of
    the same shape, or integer class labels of shape [B, *spatial] or
    [B, 1, *spatial] (the scatter_ path of the PyTorch reference).
    Returns a scalar float32 loss.
    """
    assert average in ("micro", "macro", "samples")
    B, C = x.shape[0], x.shape[1]
    S = math.prod(x.shape[2:])
    x_flat = x.reshape(B, C, S)

    is_int = jnp.issubdtype(y.dtype, jnp.integer)
    if y.ndim == x.ndim - 1 and is_int:
        labels_mode, y_flat = True, y.reshape(B, S).astype(jnp.int32)
    elif y.ndim == x.ndim and y.shape[1] == 1 and is_int and C > 1:
        labels_mode, y_flat = True, y.reshape(B, S).astype(jnp.int32)
    else:
        assert x.shape == y.shape
        labels_mode, y_flat = False, y.reshape(B, C, S)

    inter, card = _dice_partials(x_flat, y_flat, labels_mode,
                                 max_tile_lanes=max_tile_lanes)

    if average == "micro":        # reduce over all dims -> scalar dice
        I = jnp.sum(inter)
        Cd = jnp.sum(card)
    elif average == "macro":      # reduce over all dims except channel
        I = jnp.sum(inter, axis=0)
        Cd = jnp.sum(card, axis=0)
    else:                         # "samples": reduce over all dims except batch
        I = jnp.sum(inter, axis=1)
        Cd = jnp.sum(card, axis=1)

    dice = (2.0 * I + epsilon) / (Cd + epsilon)
    return jnp.mean(1.0 - dice)


def _reference(x, y, average="micro", epsilon=0.0):
    # Pure-JAX reference mirroring the PyTorch code, for a correctness check.
    B, C = x.shape[0], x.shape[1]
    p = jax.nn.softmax(x.astype(jnp.float32).reshape(B, C, -1), axis=1)
    if (y.ndim == x.ndim - 1 and jnp.issubdtype(y.dtype, jnp.integer)) or \
       (y.ndim == x.ndim and y.shape[1] == 1 and jnp.issubdtype(y.dtype, jnp.integer)):
        t = jax.nn.one_hot(y.reshape(B, -1), C, axis=1, dtype=jnp.float32)
    else:
        t = y.astype(jnp.float32).reshape(B, C, -1)
    dims = {"micro": (0, 1, 2), "macro": (0, 2), "samples": (1, 2)}[average]
    inter = jnp.sum(p * t, axis=dims)
    card = jnp.sum(p + t, axis=dims)
    dice = (2.0 * inter + epsilon) / (card + epsilon)
    return jnp.mean(1.0 - dice)


if __name__ == "__main__":
    key = jax.random.PRNGKey(0)
    kx1, ky1, kx2, ky2, kx3, ky3 = jax.random.split(key, 6)
    ok = True

    # Case 1: f32, B=2, C=4, 16x16 spatial, dense one-hot target
    #         (single boundary tile -> masked-lane path).
    B, C, H, W = 2, 4, 16, 16
    x1 = jax.random.normal(kx1, (B, C, H, W), dtype=jnp.float32)
    lbl1 = jax.random.randint(ky1, (B, H, W), 0, C)
    y1 = jax.nn.one_hot(lbl1, C, axis=1, dtype=jnp.float32)

    # Case 2: bf16, B=1, C=3, 48x48 spatial, small forced tile -> multiple
    #         spatial tiles (interior + boundary) and, on 2-TensorCore parts,
    #         the B=1 chunk split.
    B2, C2, H2, W2 = 1, 3, 48, 48
    x2 = jax.random.normal(kx2, (B2, C2, H2, W2), dtype=jnp.bfloat16)
    lbl2 = jax.random.randint(ky2, (B2, H2, W2), 0, C2)
    y2 = jax.nn.one_hot(lbl2, C2, axis=1, dtype=jnp.bfloat16)

    # Case 3: integer-label fast path (no dense one-hot in HBM), f32 logits,
    #         forced small tile -> interior + boundary tiles.
    B3, C3, H3, W3 = 2, 5, 40, 40
    x3 = jax.random.normal(kx3, (B3, C3, H3, W3), dtype=jnp.float32)
    y3 = jax.random.randint(ky3, (B3, H3, W3), 0, C3)

    cases = [
        ("f32_dense_2x4x16x16", x1, y1, None),
        ("bf16_dense_1x3x48x48_tiled", x2, y2, 2048),
        ("f32_labels_2x5x40x40_tiled", x3, y3, 1024),
    ]
    for name, x, y, max_tile_lanes in cases:
        for average in ("micro", "macro", "samples"):
            loss = soft_dice_loss(x, y, average=average, epsilon=0.0,
                                  max_tile_lanes=max_tile_lanes)
            loss = jax.block_until_ready(loss)
            ref = _reference(x, y, average=average, epsilon=0.0)
            # approx reciprocal on the EUP -> slightly looser tolerance.
            if not jnp.allclose(loss, ref, atol=2e-3, rtol=2e-3):
                ok = False
                print(f"MISMATCH ({name}, {average}): kernel={loss} ref={ref}")

    if ok:
        print("KERNEL_OK")
</pallas_src>

<mosaic_0001>
module attributes {stable_mosaic.version = 11 : i64} {
  func.func @_dice_partial_kernel(%arg0: i32, %arg1: i32, %arg2: i32, %arg3: memref<1x4x8x128xf32, #tpu.memory_space<vmem>>, %arg4: memref<1x4x8x128xf32, #tpu.memory_space<vmem>>, %arg5: memref<1x1x2x4xf32, #tpu.memory_space<vmem>>, %arg6: memref<4x128xf32, #tpu.memory_space<vmem>>, %arg7: memref<4x128xf32, #tpu.memory_space<vmem>>) attributes {dimension_semantics = [#tpu.dimension_semantics<parallel>, #tpu.dimension_semantics<parallel>, #tpu.dimension_semantics<arbitrary>], iteration_bounds = array<i64: 2, 1, 1>, scalar_prefetch = 0 : i64, scratch_operands = 2 : i64, tpu.core_type = #tpu.core_type<tc>, window_params = [{transform_indices = @transform_0, window_bounds = array<i64: 1, 4, 8, 128>}, {transform_indices = @transform_1, window_bounds = array<i64: 1, 4, 8, 128>}, {transform_indices = @transform_2, window_bounds = array<i64: 1, 1, 2, 4>}]} {
    %c0_i32 = arith.constant 0 : i32
    %0 = arith.cmpi eq, %arg2, %c0_i32 : i32
    %1 = arith.extui %0 : i1 to i32
    %c0_i32_0 = arith.constant 0 : i32
    %2 = arith.cmpi ne, %1, %c0_i32_0 : i32
    scf.if %2 {
      %cst = arith.constant 0.000000e+00 : f32
      %19 = vector.broadcast %cst : f32 to vector<4x128xf32>
      %c0 = arith.constant 0 : index
      %c0_6 = arith.constant 0 : index
      %20 = vector.load %arg6[%c0, %c0_6] : memref<4x128xf32, #tpu.memory_space<vmem>>, vector<4x128xf32>
      tpu.vector_store %arg6[%c0, %c0_6], %19 {strides = array<i32>} : memref<4x128xf32, #tpu.memory_space<vmem>>, vector<4x128xf32>,
      %cst_7 = arith.constant 0.000000e+00 : f32
      %21 = vector.broadcast %cst_7 : f32 to vector<4x128xf32>
      %c0_8 = arith.constant 0 : index
      %c0_9 = arith.constant 0 : index
      %22 = vector.load %arg7[%c0_8, %c0_9] : memref<4x128xf32, #tpu.memory_space<vmem>>, vector<4x128xf32>
      tpu.vector_store %arg7[%c0_8, %c0_9], %21 {strides = array<i32>} : memref<4x128xf32, #tpu.memory_space<vmem>>, vector<4x128xf32>,
    } else {
    }
    %c1_i32 = arith.constant 1 : i32
    %3 = arith.muli %arg1, %c1_i32 : i32
    %4 = arith.addi %3, %arg2 : i32
    %c8_i32 = arith.constant 8 : i32
    %5 = arith.muli %4, %c8_i32 : i32
    %c128_i32 = arith.constant 128 : i32
    %6 = arith.muli %5, %c128_i32 : i32
    %c1024_i32 = arith.constant 1024 : i32
    %7 = arith.addi %6, %c1024_i32 : i32
    %c256_i32 = arith.constant 256 : i32
    %8 = arith.cmpi sle, %7, %c256_i32 : i32
    %c256_i32_1 = arith.constant 256 : i32
    %9 = arith.cmpi slt, %6, %c256_i32_1 : i32
    %true = arith.constant true
    %10 = arith.xori %8, %true : i1
    %11 = arith.andi %9, %10 : i1
    %12 = arith.extui %8 : i1 to i32
    %c0_i32_2 = arith.constant 0 : i32
    %13 = arith.cmpi ne, %12, %c0_i32_2 : i32
    scf.if %13 {
      %c0 = arith.constant 0 : index
      %c0_6 = arith.constant 0 : index
      %c0_7 = arith.constant 0 : index
      %c0_8 = arith.constant 0 : index
      %19 = vector.load %arg3[%c0, %c0_6, %c0_7, %c0_8] : memref<1x4x8x128xf32, #tpu.memory_space<vmem>>, vector<1x4x8x128xf32>
      %20 = vector.shape_cast %19 : vector<1x4x8x128xf32> to vector<4x8x128xf32>
      %cst = arith.constant dense<0xFF800000> : vector<8x128xf32>
      %21 = vector.multi_reduction <maximumf>, %20, %cst [0] : vector<4x8x128xf32> to vector<8x128xf32>
      %22 = vector.shape_cast %21 : vector<8x128xf32> to vector<1x8x128xf32>
      %23 = vector.broadcast %22 : vector<1x8x128xf32> to vector<4x8x128xf32>
      %24 = arith.subf %20, %23 : vector<4x8x128xf32>
      %25 = math.exp %24 : vector<4x8x128xf32>
      %cst_9 = arith.constant dense<0.000000e+00> : vector<8x128xf32>
      %26 = vector.multi_reduction <add>, %25, %cst_9 [0] : vector<4x8x128xf32> to vector<8x128xf32>
      %27 = vector.shape_cast %26 : vector<8x128xf32> to vector<1x8x128xf32>
      %28 = tpu.reciprocal %27 {approx = true} : vector<1x8x128xf32> -> vector<1x8x128xf32>
      %29 = vector.broadcast %28 : vector<1x8x128xf32> to vector<4x8x128xf32>
      %30 = arith.mulf %25, %29 : vector<4x8x128xf32>
      %c0_10 = arith.constant 0 : index
      %c0_11 = arith.constant 0 : index
      %c0_12 = arith.constant 0 : index
      %c0_13 = arith.constant 0 : index
      %31 = vector.load %arg4[%c0_10, %c0_11, %c0_12, %c0_13] : memref<1x4x8x128xf32, #tpu.memory_space<vmem>>, vector<1x4x8x128xf32>
      %32 = vector.shape_cast %31 : vector<1x4x8x128xf32> to vector<4x8x128xf32>
      %c0_14 = arith.constant 0 : index
      %c0_15 = arith.constant 0 : index
      %33 = vector.load %arg6[%c0_14, %c0_15] : memref<4x128xf32, #tpu.memory_space<vmem>>, vector<4x128xf32>
      %34 = arith.mulf %30, %32 : vector<4x8x128xf32>
      %cst_16 = arith.constant dense<0.000000e+00> : vector<4x128xf32>
      %35 = vector.multi_reduction <add>, %34, %cst_16 [1] : vector<4x8x128xf32> to vector<4x128xf32>
      %36 = arith.addf %33, %35 : vector<4x128xf32>
      %c0_17 = arith.constant 0 : index
      %c0_18 = arith.constant 0 : index
      %37 = vector.load %arg6[%c0_17, %c0_18] : memref<4x128xf32, #tpu.memory_space<vmem>>, vector<4x128xf32>
      tpu.vector_store %arg6[%c0_17, %c0_18], %36 {strides = array<i32>} : memref<4x128xf32, #tpu.memory_space<vmem>>, vector<4x128xf32>,
      %c0_19 = arith.constant 0 : index
      %c0_20 = arith.constant 0 : index
      %38 = vector.load %arg7[%c0_19, %c0_20] : memref<4x128xf32, #tpu.memory_space<vmem>>, vector<4x128xf32>
      %39 = arith.addf %30, %32 : vector<4x8x128xf32>
      %cst_21 = arith.constant dense<0.000000e+00> : vector<4x128xf32>
      %40 = vector.multi_reduction <add>, %39, %cst_21 [1] : vector<4x8x128xf32> to vector<4x128xf32>
      %41 = arith.addf %38, %40 : vector<4x128xf32>
      %c0_22 = arith.constant 0 : index
      %c0_23 = arith.constant 0 : index
      %42 = vector.load %arg7[%c0_22, %c0_23] : memref<4x128xf32, #tpu.memory_space<vmem>>, vector<4x128xf32>
      tpu.vector_store %arg7[%c0_22, %c0_23], %41 {strides = array<i32>} : memref<4x128xf32, #tpu.memory_space<vmem>>, vector<4x128xf32>,
    } else {
    }
    %14 = arith.extui %11 : i1 to i32
    %c0_i32_3 = arith.constant 0 : i32
    %15 = arith.cmpi ne, %14, %c0_i32_3 : i32
    scf.if %15 {
      %c0 = arith.constant 0 : index
      %c0_6 = arith.constant 0 : index
      %c0_7 = arith.constant 0 : index
      %c0_8 = arith.constant 0 : index
      %19 = vector.load %arg3[%c0, %c0_6, %c0_7, %c0_8] : memref<1x4x8x128xf32, #tpu.memory_space<vmem>>, vector<1x4x8x128xf32>
      %20 = vector.shape_cast %19 : vector<1x4x8x128xf32> to vector<4x8x128xf32>
      %cst = arith.constant dense<0xFF800000> : vector<8x128xf32>
      %21 = vector.multi_reduction <maximumf>, %20, %cst [0] : vector<4x8x128xf32> to vector<8x128xf32>
      %22 = vector.shape_cast %21 : vector<8x128xf32> to vector<1x8x128xf32>
      %23 = vector.broadcast %22 : vector<1x8x128xf32> to vector<4x8x128xf32>
      %24 = arith.subf %20, %23 : vector<4x8x128xf32>
      %25 = math.exp %24 : vector<4x8x128xf32>
      %cst_9 = arith.constant dense<0.000000e+00> : vector<8x128xf32>
      %26 = vector.multi_reduction <add>, %25, %cst_9 [0] : vector<4x8x128xf32> to vector<8x128xf32>
      %27 = vector.shape_cast %26 : vector<8x128xf32> to vector<1x8x128xf32>
      %28 = tpu.reciprocal %27 {approx = true} : vector<1x8x128xf32> -> vector<1x8x128xf32>
      %29 = vector.broadcast %28 : vector<1x8x128xf32> to vector<4x8x128xf32>
      %30 = arith.mulf %25, %29 : vector<4x8x128xf32>
      %c0_10 = arith.constant 0 : index
      %c0_11 = arith.constant 0 : index
      %c0_12 = arith.constant 0 : index
      %c0_13 = arith.constant 0 : index
      %31 = vector.load %arg4[%c0_10, %c0_11, %c0_12, %c0_13] : memref<1x4x8x128xf32, #tpu.memory_space<vmem>>, vector<1x4x8x128xf32>
      %32 = vector.shape_cast %31 : vector<1x4x8x128xf32> to vector<4x8x128xf32>
      %33 = tpu.iota {dimensions = array<i32: 0>} : vector<8x128xi32>
      %34 = tpu.iota {dimensions = array<i32: 1>} : vector<8x128xi32>
      %35 = vector.broadcast %5 : i32 to vector<8x128xi32>
      %36 = arith.addi %35, %33 : vector<8x128xi32>
      %c128_i32_14 = arith.constant 128 : i32
      %37 = vector.broadcast %c128_i32_14 : i32 to vector<8x128xi32>
      %38 = arith.muli %36, %37 : vector<8x128xi32>
      %39 = arith.addi %38, %34 : vector<8x128xi32>
      %c256_i32_15 = arith.constant 256 : i32
      %40 = vector.broadcast %c256_i32_15 : i32 to vector<8x128xi32>
      %41 = arith.cmpi slt, %39, %40 : vector<8x128xi32>
      %42 = vector.shape_cast %41 : vector<8x128xi1> to vector<1x8x128xi1>
      %cst_16 = arith.constant 0.000000e+00 : f32
      %43 = vector.shape_cast %42 : vector<1x8x128xi1> to vector<1x8x128xi1>
      %44 = vector.broadcast %43 : vector<1x8x128xi1> to vector<4x8x128xi1>
      %45 = vector.broadcast %cst_16 : f32 to vector<4x8x128xf32>
      %46 = arith.select %44, %30, %45 : vector<4x8x128xi1>, vector<4x8x128xf32>
      %c0_17 = arith.constant 0 : index
      %c0_18 = arith.constant 0 : index
      %47 = vector.load %arg6[%c0_17, %c0_18] : memref<4x128xf32, #tpu.memory_space<vmem>>, vector<4x128xf32>
      %48 = arith.mulf %46, %32 : vector<4x8x128xf32>
      %cst_19 = arith.constant dense<0.000000e+00> : vector<4x128xf32>
      %49 = vector.multi_reduction <add>, %48, %cst_19 [1] : vector<4x8x128xf32> to vector<4x128xf32>
      %50 = arith.addf %47, %49 : vector<4x128xf32>
      %c0_20 = arith.constant 0 : index
      %c0_21 = arith.constant 0 : index
      %51 = vector.load %arg6[%c0_20, %c0_21] : memref<4x128xf32, #tpu.memory_space<vmem>>, vector<4x128xf32>
      tpu.vector_store %arg6[%c0_20, %c0_21], %50 {strides = array<i32>} : memref<4x128xf32, #tpu.memory_space<vmem>>, vector<4x128xf32>,
      %c0_22 = arith.constant 0 : index
      %c0_23 = arith.constant 0 : index
      %52 = vector.load %arg7[%c0_22, %c0_23] : memref<4x128xf32, #tpu.memory_space<vmem>>, vector<4x128xf32>
      %53 = arith.addf %46, %32 : vector<4x8x128xf32>
      %cst_24 = arith.constant dense<0.000000e+00> : vector<4x128xf32>
      %54 = vector.multi_reduction <add>, %53, %cst_24 [1] : vector<4x8x128xf32> to vector<4x128xf32>
      %55 = arith.addf %52, %54 : vector<4x128xf32>
      %c0_25 = arith.constant 0 : index
      %c0_26 = arith.constant 0 : index
      %56 = vector.load %arg7[%c0_25, %c0_26] : memref<4x128xf32, #tpu.memory_space<vmem>>, vector<4x128xf32>
      tpu.vector_store %arg7[%c0_25, %c0_26], %55 {strides = array<i32>} : memref<4x128xf32, #tpu.memory_space<vmem>>, vector<4x128xf32>,
    } else {
    }
    %c0_i32_4 = arith.constant 0 : i32
    %16 = arith.cmpi eq, %arg2, %c0_i32_4 : i32
    %17 = arith.extui %16 : i1 to i32
    %c0_i32_5 = arith.constant 0 : i32
    %18 = arith.cmpi ne, %17, %c0_i32_5 : i32
    scf.if %18 {
      %c0 = arith.constant 0 : index
      %c0_6 = arith.constant 0 : index
      %19 = vector.load %arg6[%c0, %c0_6] : memref<4x128xf32, #tpu.memory_space<vmem>>, vector<4x128xf32>
      %cst = arith.constant dense<0.000000e+00> : vector<4xf32>
      %20 = vector.multi_reduction <add>, %19, %cst [1] : vector<4x128xf32> to vector<4xf32>
      %c0_7 = arith.constant 0 : index
      %c0_8 = arith.constant 0 : index
      %c0_9 = arith.constant 0 : index
      %c0_10 = arith.constant 0 : index
      %21 = vector.load %arg5[%c0_7, %c0_8, %c0_9, %c0_10] : memref<1x1x2x4xf32, #tpu.memory_space<vmem>>, vector<1x1x1x4xf32>
      %22 = vector.shape_cast %21 : vector<1x1x1x4xf32> to vector<4xf32>
      %23 = vector.shape_cast %20 : vector<4xf32> to vector<1x1x1x4xf32>
      tpu.vector_store %arg5[%c0_7, %c0_8, %c0_9, %c0_10], %23 {strides = array<i32>} : memref<1x1x2x4xf32, #tpu.memory_space<vmem>>, vector<1x1x1x4xf32>,
      %c0_11 = arith.constant 0 : index
      %c0_12 = arith.constant 0 : index
      %24 = vector.load %arg7[%c0_11, %c0_12] : memref<4x128xf32, #tpu.memory_space<vmem>>, vector<4x128xf32>
      %cst_13 = arith.constant dense<0.000000e+00> : vector<4xf32>
      %25 = vector.multi_reduction <add>, %24, %cst_13 [1] : vector<4x128xf32> to vector<4xf32>
      %c0_14 = arith.constant 0 : index
      %c0_15 = arith.constant 0 : index
      %c1 = arith.constant 1 : index
      %c0_16 = arith.constant 0 : index
      %26 = vector.load %arg5[%c0_14, %c0_15, %c1, %c0_16] : memref<1x1x2x4xf32, #tpu.memory_space<vmem>>, vector<1x1x1x4xf32>
      %27 = vector.shape_cast %26 : vector<1x1x1x4xf32> to vector<4xf32>
      %28 = vector.shape_cast %25 : vector<4xf32> to vector<1x1x1x4xf32>
      tpu.vector_store %arg5[%c0_14, %c0_15, %c1, %c0_16], %28 {strides = array<i32>} : memref<1x1x2x4xf32, #tpu.memory_space<vmem>>, vector<1x1x1x4xf32>,
    } else {
    }
    return
  }
  func.func @transform_0(%arg0: i32, %arg1: i32, %arg2: i32) -> (i32, i32, i32, i32) {
    %c1_i32 = arith.constant 1 : i32
    %0 = arith.muli %arg1, %c1_i32 : i32
    %1 = arith.addi %0, %arg2 : i32
    %c0_i32 = arith.constant 0 : i32
    %c0_i32_0 = arith.constant 0 : i32
    %c0_i32_1 = arith.constant 0 : i32
    return %arg0, %c0_i32, %1, %c0_i32_0 : i32, i32, i32, i32
  }
  func.func @transform_1(%arg0: i32, %arg1: i32, %arg2: i32) -> (i32, i32, i32, i32) {
    %c1_i32 = arith.constant 1 : i32
    %0 = arith.muli %arg1, %c1_i32 : i32
    %1 = arith.addi %0, %arg2 : i32
    %c0_i32 = arith.constant 0 : i32
    %c0_i32_0 = arith.constant 0 : i32
    %c0_i32_1 = arith.constant 0 : i32
    return %arg0, %c0_i32, %1, %c0_i32_0 : i32, i32, i32, i32
  }
  func.func @transform_2(%arg0: i32, %arg1: i32, %arg2: i32) -> (i32, i32, i32, i32) {
    %c0_i32 = arith.constant 0 : i32
    %c0_i32_0 = arith.constant 0 : i32
    %c0_i32_1 = arith.constant 0 : i32
    return %arg0, %arg1, %c0_i32, %c0_i32_0 : i32, i32, i32, i32
  }
}

</mosaic_0001>

<llo_original>
// kernel: tpu_custom_call.1
$region0: #{tpu_custom_call.1}
  #allocation0 [shape = 'u32[]', space=smem, size = 0x4, offset = 0x4, fixed_abs, tag = 'smem constant byte address 0x4 - core index']
  #allocation1 [shape = 'u32[144,128]{1,0:T(1,128)}', space=vmem, size = 0x12000, scoped, tag = 'internal scratch']
  #allocation2 [shape = 'f32[4,128]{1,0:T(4,128)}', space=vmem, size = 0x800, scoped, tag = 'scratch operand']
  #allocation3 [shape = 'f32[4,128]{1,0:T(4,128)}', space=vmem, size = 0x800, scoped, tag = 'scratch operand']
  %s0 = inlined_call_operand.hbm [shape: f32[2,4,8,128], index: 0, kind: input, shape index: {}]
  %s1 = inlined_call_operand.hbm [shape: f32[2,4,8,128], index: 1, kind: input, shape index: {}]
  %s2 = inlined_call_operand.hbm [shape: f32[2,1,2,4], index: 2, kind: output, shape index: {}]
  %s3 = sld [smem:[#allocation0]]
  $region65: #{tpu_custom_call.1} parent=0
    _
  %s5 = ssub.s32 1, %s3
  %s6 = scalar_select 0, %s5, %s3
  $region1: #{tpu_custom_call.1} parent=0
    #allocation4 [shape = 'u8[32768]{0}', space=vmem, size = 0x8000, scoped, tag = 'input window, operand 0']
    #allocation5 [shape = 's32[2]{0}', space=sflag, size = 0x8, scoped, tag = 'scoped memory for tpu_custom_call.1']
    #allocation6 [shape = 's32[2]{0}', space=sflag, size = 0x8, scoped, tag = 'scoped memory for tpu_custom_call.1']
    #allocation7 [shape = 'u8[32768]{0}', space=vmem, size = 0x8000, scoped, tag = 'input window, operand 1']
    #allocation8 [shape = 's32[2]{0}', space=sflag, size = 0x8, scoped, tag = 'scoped memory for tpu_custom_call.1']
    #allocation9 [shape = 'u8[2048]{0}', space=vmem, size = 0x800, scoped, tag = 'output window, operand 0']
    %7 = vsyncpa [#allocation5], 0
    %s8 = scalar_lea.sflag [#allocation5], 1
    %9 = vsyncpa %s8, 0
    %10 = vsyncpa [#allocation8], 0
    %s11 = scalar_lea.sflag [#allocation8], 1
    %12 = vsyncpa %s11, 0
    %13 = vsyncpa [#allocation6], 0
    %s14 = scalar_lea.sflag [#allocation6], 1
    %15 = vsyncpa %s14, 0
    loop: start=0, step=1, limit=4
    $region2: #{tpu_custom_call.1} parent=1 // loop_pre_header
      _
    $region3: #{tpu_custom_call.1} parent=1 // loop_header
      %s17 = sphi 0, %s21
      %p18 = scmp.ge.s32.totalorder %s17, 4
      %s24 = sphi 0, %s43
      %s25 = sphi 0, %s39
      %s26 = sphi 0, %s35
      %s27 = sphi 0, %s24
      %s28 = sphi 0, %s25
      %s29 = sphi 0, %s26
      %s30 = sphi 0, %s27
      %s31 = sphi 0, %s28
      %s32 = sphi 0, %s29
      %s50 = sphi 0, %s52
      %s53 = sphi 0, %s50
      %s54 = sphi 0, %s53
      %s70 = sphi 0, %s54
      %s80 = sphi 0, %s82
      %s83 = sphi 0, %s80
      %s84 = sphi 0, %s83
      %s100 = sphi 0, %s84
      %s108 = sphi 0, %s110
      %s111 = sphi 0, %s108
      %s112 = sphi 0, %s111
      %s128 = sphi 0, %s112
    $region4: #{tpu_custom_call.1} parent=1 // loop_header_branch
      %20 = sbr.rel (%p18) target = $region8
    $region5: #{tpu_custom_call.1} parent=1 // loop_body
      %s22 = ssub.s32 %s17, 1
      %s23 = ssub.s32 %s17, 2
      %s33 = sadd.s32 1, %s26
      %p34 = scmp.ge.s32.totalorder %s33, 1
      %s35 = scalar_select %p34, 0, %s33
      %s36 = sadd.s32 1, %s25
      %s37 = scalar_select %p34, %s36, %s25
      %p38 = scmp.ge.s32.totalorder %s37, 1
      %s39 = scalar_select %p38, 0, %s37
      %s40 = sadd.s32 1, %s24
      %s41 = scalar_select %p38, %s40, %s24
      %p42 = scmp.ge.s32.totalorder %s41, 2
      %s43 = scalar_select %p42, 0, %s41
      %s44 = sadd.s32 %s25, %s26
      %s45 = sadd.s32 %s39, %s35
      %s46 = ssub.s32 %s24, %s43
      %s47 = ssub.s32 %s44, %s45
      %s48 = sor.u32 %s46, %s47
      %p49 = scmp.eq.s32.totalorder %s48, 0
      %s51 = sadd.s32 %s50, 1
      %s52 = scalar_select %p49, %s50, %s51
      %p55 = pneg %p49
      %p56 = scmp.eq.s32.totalorder %s17, 1
      %p57 = por %p55, %p56
      %p58 = scmp.ne.s32.totalorder %s50, %s53
      %p59 = scmp.eq.s32.totalorder %s17, 0
      %p60 = por %p58, %p59
      %p61 = scmp.ne.s32.totalorder %s50, %s53
      %p62 = scmp.eq.s32.totalorder %s22, 1
      %p63 = por %p61, %p62
      %p64 = scmp.ne.s32.totalorder %s53, %s54
      %p65 = scmp.eq.s32.totalorder %s22, 0
      %p66 = por %p64, %p65
      %p67 = scmp.ne.s32.totalorder %s53, %s54
      %p68 = scmp.eq.s32.totalorder %s23, 1
      %p69 = por %p67, %p68
      %p71 = scmp.ne.s32.totalorder %s54, %s70
      %p72 = scmp.eq.s32.totalorder %s23, 0
      %p73 = por %p71, %p72
      %s74 = sadd.s32 %s25, %s26
      %s75 = sadd.s32 %s39, %s35
      %s76 = ssub.s32 %s24, %s43
      %s77 = ssub.s32 %s74, %s75
      %s78 = sor.u32 %s76, %s77
      %p79 = scmp.eq.s32.totalorder %s78, 0
      %s81 = sadd.s32 %s80, 1
      %s82 = scalar_select %p79, %s80, %s81
      %p85 = pneg %p79
      %p86 = scmp.eq.s32.totalorder %s17, 1
      %p87 = por %p85, %p86
      %p88 = scmp.ne.s32.totalorder %s80, %s83
      %p89 = scmp.eq.s32.totalorder %s17, 0
      %p90 = por %p88, %p89
      %p91 = scmp.ne.s32.totalorder %s80, %s83
      %p92 = scmp.eq.s32.totalorder %s22, 1
      %p93 = por %p91, %p92
      %p94 = scmp.ne.s32.totalorder %s83, %s84
      %p95 = scmp.eq.s32.totalorder %s22, 0
      %p96 = por %p94, %p95
      %p97 = scmp.ne.s32.totalorder %s83, %s84
      %p98 = scmp.eq.s32.totalorder %s23, 1
      %p99 = por %p97, %p98
      %p101 = scmp.ne.s32.totalorder %s84, %s100
      %p102 = scmp.eq.s32.totalorder %s23, 0
      %p103 = por %p101, %p102
      %s104 = ssub.s32 %s24, %s43
      %s105 = ssub.s32 %s25, %s39
      %s106 = sor.u32 %s104, %s105
      %p107 = scmp.eq.s32.totalorder %s106, 0
      %s109 = sadd.s32 %s108, 1
      %s110 = scalar_select %p107, %s108, %s109
      %p113 = pneg %p107
      %p114 = scmp.eq.s32.totalorder %s17, 1
      %p115 = por %p113, %p114
      %p116 = scmp.ne.s32.totalorder %s108, %s111
      %p117 = scmp.eq.s32.totalorder %s17, 0
      %p118 = por %p116, %p117
      %p119 = scmp.ne.s32.totalorder %s108, %s111
      %p120 = scmp.eq.s32.totalorder %s22, 1
      %p121 = por %p119, %p120
      %p122 = scmp.ne.s32.totalorder %s111, %s112
      %p123 = scmp.eq.s32.totalorder %s22, 0
      %p124 = por %p122, %p123
      %p125 = scmp.ne.s32.totalorder %s111, %s112
      %p126 = scmp.eq.s32.totalorder %s23, 1
      %p127 = por %p125, %p126
      %p129 = scmp.ne.s32.totalorder %s112, %s128
      %p130 = scmp.eq.s32.totalorder %s23, 0
      %p131 = por %p129, %p130
      %p132 = scmp.le.s32.totalorder 1, %s17
      %p133 = scmp.lt.s32.totalorder %s17, 3
      %p134 = pnand %p132, %p133
      %p135 = pneg %p134
      // Predicated region
      $region9: #{tpu_custom_call.1} parent=5 // pred_check
        _
      $region10: #{tpu_custom_call.1} parent=5 // pred_check_branch
        %137 = sbr.rel (%p134) target = $region12
      $region11: #{tpu_custom_call.1} parent=5 // pred_region
        %s138 = ssub.s32 %s17, 1
      $region12: #{tpu_custom_call.1} parent=5 // pred_fallthru
        _
      %p139 = scmp.lt.s32.totalorder %s17, 2
      // Predicated region
      $region13: #{tpu_custom_call.1} parent=5 // pred_check
        %p140 = pneg %p139
      $region14: #{tpu_custom_call.1} parent=5 // pred_check_branch
        %142 = sbr.rel (%p140) target = $region16
      $region15: #{tpu_custom_call.1} parent=5 // pred_region
        // Predicated region
        $region17: #{tpu_custom_call.1} parent=15 // pred_check
          %p143 = pneg %p60
        $region18: #{tpu_custom_call.1} parent=15 // pred_check_branch
          %145 = sbr.rel (%p143) target = $region20
        $region19: #{tpu_custom_call.1} parent=15 // pred_region
          %s146 = sand.u32 %s50, 1
          %s147 = scalar_lea.sflag [#allocation5], %s146
          %s148 = sand.u32 %s50, 1
          %s149 = smul.addr %s148, 32
          %s150 = scalar_lea.vmem [#allocation4], %s149
          %s151 = sadd.s32 %s25, %s26
          %s153 = ssub.s32 512, 512
          %154 = vsyncadd %s147, %s153
          %s155 = smul.addr %s24, 4
          %s156 = sadd.s32 %s151, %s155
          %s157 = smul.addr %s156, 128
          %s158 = scalar_lea.hbm %s0, %s157
          %s159 = sshll.u32 %s150, 4
          %s160 = int_to_ptr.vmem [resolvable:$true] %s159
          %165 = dma.hbm_to_vmem [thread:$0]  %s158, 512, %s160, %s147, 128, 128, 8
        $region20: #{tpu_custom_call.1} parent=15 // pred_fallthru
          _
        // Predicated region
        $region21: #{tpu_custom_call.1} parent=15 // pred_check
          %p166 = pneg %p90
        $region22: #{tpu_custom_call.1} parent=15 // pred_check_branch
          %168 = sbr.rel (%p166) target = $region24
        $region23: #{tpu_custom_call.1} parent=15 // pred_region
          %s169 = sand.u32 %s80, 1
          %s170 = scalar_lea.sflag [#allocation8], %s169
          %s171 = sand.u32 %s80, 1
          %s172 = smul.addr %s171, 32
          %s173 = scalar_lea.vmem [#allocation7], %s172
          %s174 = sadd.s32 %s25, %s26
          %s176 = ssub.s32 512, 512
          %177 = vsyncadd %s170, %s176
          %s178 = smul.addr %s24, 4
          %s179 = sadd.s32 %s174, %s178
          %s180 = smul.addr %s179, 128
          %s181 = scalar_lea.hbm %s1, %s180
          %s182 = sshll.u32 %s173, 4
          %s183 = int_to_ptr.vmem [resolvable:$true] %s182
          %188 = dma.hbm_to_vmem [thread:$0]  %s181, 512, %s183, %s170, 128, 128, 8
        $region24: #{tpu_custom_call.1} parent=15 // pred_fallthru
          _
      $region16: #{tpu_custom_call.1} parent=5 // pred_fallthru
        _
      %p189 = scmp.le.s32.totalorder 1, %s17
      %p190 = scmp.lt.s32.totalorder %s17, 3
      %p191 = pnand %p189, %p190
      %p192 = pneg %p191
      // Predicated region
      $region25: #{tpu_custom_call.1} parent=5 // pred_check
        _
      $region26: #{tpu_custom_call.1} parent=5 // pred_check_branch
        %194 = sbr.rel (%p191) target = $region28
      $region27: #{tpu_custom_call.1} parent=5 // pred_region
        %s195 = ssub.s32 %s17, 1
        %s196 = sand.u32 %s53, 1
        %s197 = scalar_lea.sflag [#allocation5], %s196
        %s198 = sand.u32 %s53, 1
        %s199 = smul.addr %s198, 32
        %s200 = scalar_lea.vmem [#allocation4], %s199
        // Predicated region
        $region29: #{tpu_custom_call.1} parent=27 // pred_check
          %p201 = pneg %p66
        $region30: #{tpu_custom_call.1} parent=27 // pred_check_branch
          %203 = sbr.rel (%p201) target = $region32
        $region31: #{tpu_custom_call.1} parent=27 // pred_region
          %204 = dma.done %s197, 512
        $region32: #{tpu_custom_call.1} parent=27 // pred_fallthru
          _
        %s205 = sand.u32 %s83, 1
        %s206 = scalar_lea.sflag [#allocation8], %s205
        %s207 = sand.u32 %s83, 1
        %s208 = smul.addr %s207, 32
        %s209 = scalar_lea.vmem [#allocation7], %s208
        // Predicated region
        $region33: #{tpu_custom_call.1} parent=27 // pred_check
          %p210 = pneg %p96
        $region34: #{tpu_custom_call.1} parent=27 // pred_check_branch
          %212 = sbr.rel (%p210) target = $region36
        $region35: #{tpu_custom_call.1} parent=27 // pred_region
          %213 = dma.done %s206, 512
        $region36: #{tpu_custom_call.1} parent=27 // pred_fallthru
          _
        %s214 = sand.u32 %s53, 1
        %s215 = scalar_lea.sflag [#allocation5], %s214
        %s216 = sand.u32 %s53, 1
        %s217 = smul.addr %s216, 32
        %s218 = scalar_lea.vmem [#allocation4], %s217
        %p219 = pneg %p66
        %p220 = pneg %p63
        %s221 = sand.u32 %s83, 1
        %s222 = scalar_lea.sflag [#allocation8], %s221
        %s223 = sand.u32 %s83, 1
        %s224 = smul.addr %s223, 32
        %s225 = scalar_lea.vmem [#allocation7], %s224
        %p226 = pneg %p96
        %p227 = pneg %p93
        %p228 = pneg %p124
        %p229 = pneg %p121
        %s230 = sand.u32 %s111, 1
        %s231 = scalar_lea.sflag [#allocation6], %s230
        %s232 = sand.u32 %s111, 1
        %s233 = smul.addr %s232, 2
        %s234 = scalar_lea.vmem [#allocation9], %s233
        %s235 = sadd.s32 %s28, %s29
        %s236 = sadd.s32 %s28, %s29
        %p237 = scmp.eq.s32.totalorder %s29, 0
        // Predicated region
        $region37: #{tpu_custom_call.1} parent=27 // pred_check
          %p238 = pneg %p237
        $region38: #{tpu_custom_call.1} parent=27 // pred_check_branch
          %240 = sbr.rel (%p238) target = $region40
        $region39: #{tpu_custom_call.1} parent=27 // pred_region
          %241 = vst [vmem:[#allocation2] sm:$0xf] 0.0
          %242 = vst [vmem:[#allocation3] sm:$0xf] 0.0
        $region40: #{tpu_custom_call.1} parent=27 // pred_fallthru
          _
        %s243 = sadd.s32 %s28, %s29
        %s244 = smul.u32 %s243, 8
        %s245 = smul.u32 %s243, 1024
        %s246 = sadd.s32 %s245, 1024
        %p247 = scmp.le.s32.totalorder %s246, 256
        %p248 = scmp.lt.s32.totalorder %s245, 256
        %p249 = scmp.gt.s32.totalorder %s246, 256
        %p250 = pnand %p248, %p249
        %p251 = pneg %p250
        // Predicated region
        $region41: #{tpu_custom_call.1} parent=27 // pred_check
          %p252 = pneg %p247
        $region42: #{tpu_custom_call.1} parent=27 // pred_check_branch
          %254 = sbr.rel (%p252) target = $region44
        $region43: #{tpu_custom_call.1} parent=27 // pred_region
          %v255 = vld [vmem:[%s200] sm:$0xff]
          %v256 = vld [vmem:[%s200 + $0x8] sm:$0xff]
          %v257 = vld [vmem:[%s200 + $0x10] sm:$0xff]
          %v258 = vld [vmem:[%s200 + $0x18] sm:$0xff]
          %v259 = vmax.f32 %v255, %v256
          %v260 = vmax.f32 %v257, %v258
          %v261 = vmax.f32 %v259, %v260
          %v262 = vsub.f32 %v255, %v261
          %v263 = vsub.f32 %v256, %v261
          %v264 = vsub.f32 %v257, %v261
          %v265 = vsub.f32 %v258, %v261
          %v266 = vmul.f32 %v262, 1.442695
          %v267 = vpow.pop %v266
          %v268 = vmul.f32 %v263, 1.442695
          %v269 = vpow.pop %v268
          %v270 = vmul.f32 %v264, 1.442695
          %v271 = vpow.pop %v270
          %v272 = vmul.f32 %v265, 1.442695
          %v273 = vpow.pop %v272
          %v274 = vadd.f32 %v267, %v269
          %v275 = vadd.f32 %v274, %v271
          %v276 = vadd.f32 %v275, %v273
          %v277 = vrcp.pop %v276
          %v278 = vmul.f32 %v267, %v277
          %v279 = vmul.f32 %v269, %v277
          %v280 = vmul.f32 %v271, %v277
          %v281 = vmul.f32 %v273, %v277
          %v282 = vld [vmem:[%s209] sm:$0xff]
          %v283 = vld [vmem:[%s209 + $0x8] sm:$0xff]
          %v284 = vld [vmem:[%s209 + $0x10] sm:$0xff]
          %v285 = vld [vmem:[%s209 + $0x18] sm:$0xff]
          %v286 = vld [vmem:[#allocation2] sm:$0xf]
          %v287 = vmul.f32 %v278, %v282
          %v288 = vmul.f32 %v279, %v283
          %v289 = vmul.f32 %v280, %v284
          %v290 = vmul.f32 %v281, %v285
          %v291 = vrot.slane %v287, 4
          %v292 = vadd.f32 %v287, %v291
          %v293 = vrot.slane %v292, 2
          %v294 = vadd.f32 %v292, %v293
          %v295 = vrot.slane %v294, 1
          %v296 = vadd.f32 %v294, %v295
          %v297 = vrot.slane %v288, 4
          %v298 = vadd.f32 %v288, %v297
          %v299 = vrot.slane %v298, 2
          %v300 = vadd.f32 %v298, %v299
          %v301 = vrot.slane %v300, 1
          %v302 = vadd.f32 %v300, %v301
          %v303 = vrot.slane %v289, 4
          %v304 = vadd.f32 %v289, %v303
          %v305 = vrot.slane %v304, 2
          %v306 = vadd.f32 %v304, %v305
          %v307 = vrot.slane %v306, 1
          %v308 = vadd.f32 %v306, %v307
          %v309 = vrot.slane %v290, 4
          %v310 = vadd.f32 %v290, %v309
          %v311 = vrot.slane %v310, 2
          %v312 = vadd.f32 %v310, %v311
          %v313 = vrot.slane %v312, 1
          %v314 = vadd.f32 %v312, %v313
          %vm319 = vcmask 1041409
          %v320 = vsel %vm319, %v302, %v296
          %vm321 = vcmask 1042434
          %v322 = vsel %vm321, %v308, %v320
          %vm323 = vcmask 1043459
          %v324 = vsel %vm323, %v314, %v322
          %v326 = vadd.f32 %v286, %v324
          %327 = vst [vmem:[#allocation2] sm:$0xf] %v326
          %v328 = vld [vmem:[#allocation3] sm:$0xf]
          %v329 = vadd.f32 %v278, %v282
          %v330 = vadd.f32 %v279, %v283
          %v331 = vadd.f32 %v280, %v284
          %v332 = vadd.f32 %v281, %v285
          %v333 = vrot.slane %v329, 4
          %v334 = vadd.f32 %v329, %v333
          %v335 = vrot.slane %v334, 2
          %v336 = vadd.f32 %v334, %v335
          %v337 = vrot.slane %v336, 1
          %v338 = vadd.f32 %v336, %v337
          %v339 = vrot.slane %v330, 4
          %v340 = vadd.f32 %v330, %v339
          %v341 = vrot.slane %v340, 2
          %v342 = vadd.f32 %v340, %v341
          %v343 = vrot.slane %v342, 1
          %v344 = vadd.f32 %v342, %v343
          %v345 = vrot.slane %v331, 4
          %v346 = vadd.f32 %v331, %v345
          %v347 = vrot.slane %v346, 2
          %v348 = vadd.f32 %v346, %v347
          %v349 = vrot.slane %v348, 1
          %v350 = vadd.f32 %v348, %v349
          %v351 = vrot.slane %v332, 4
          %v352 = vadd.f32 %v332, %v351
          %v353 = vrot.slane %v352, 2
          %v354 = vadd.f32 %v352, %v353
          %v355 = vrot.slane %v354, 1
          %v356 = vadd.f32 %v354, %v355
          %v361 = vsel %vm319, %v344, %v338
          %v362 = vsel %vm321, %v350, %v361
          %v363 = vsel %vm323, %v356, %v362
          %v365 = vadd.f32 %v328, %v363
          %366 = vst [vmem:[#allocation3] sm:$0xf] %v365
        $region44: #{tpu_custom_call.1} parent=27 // pred_fallthru
          _
        // Predicated region
        $region45: #{tpu_custom_call.1} parent=27 // pred_check
          _
        $region46: #{tpu_custom_call.1} parent=27 // pred_check_branch
          %368 = sbr.rel (%p250) target = $region48
        $region47: #{tpu_custom_call.1} parent=27 // pred_region
          %v369 = vld [vmem:[%s200] sm:$0xff]
          %v370 = vld [vmem:[%s200 + $0x8] sm:$0xff]
          %v371 = vld [vmem:[%s200 + $0x10] sm:$0xff]
          %v372 = vld [vmem:[%s200 + $0x18] sm:$0xff]
          %v373 = vmax.f32 %v369, %v370
          %v374 = vmax.f32 %v371, %v372
          %v375 = vmax.f32 %v373, %v374
          %v376 = vsub.f32 %v369, %v375
          %v377 = vsub.f32 %v370, %v375
          %v378 = vsub.f32 %v371, %v375
          %v379 = vsub.f32 %v372, %v375
          %v380 = vmul.f32 %v376, 1.442695
          %v381 = vpow.pop %v380
          %v382 = vmul.f32 %v377, 1.442695
          %v383 = vpow.pop %v382
          %v384 = vmul.f32 %v378, 1.442695
          %v385 = vpow.pop %v384
          %v386 = vmul.f32 %v379, 1.442695
          %v387 = vpow.pop %v386
          %v388 = vadd.f32 %v381, %v383
          %v389 = vadd.f32 %v388, %v385
          %v390 = vadd.f32 %v389, %v387
          %v391 = vrcp.pop %v390
          %v392 = vmul.f32 %v381, %v391
          %v393 = vmul.f32 %v383, %v391
          %v394 = vmul.f32 %v385, %v391
          %v395 = vmul.f32 %v387, %v391
          %v396 = vld [vmem:[%s209] sm:$0xff]
          %v397 = vld [vmem:[%s209 + $0x8] sm:$0xff]
          %v398 = vld [vmem:[%s209 + $0x10] sm:$0xff]
          %v399 = vld [vmem:[%s209 + $0x18] sm:$0xff]
          %v400 = vlaneseq
          %v401 = vshrl.u32 %v400, 7
          %v402 = vlaneseq
          %v403 = vand.u32 %v402, 127
          %v404 = vstv %s244
          %v405 = vadd.s32 %v404, %v401
          %v406 = vmul.u32 %v405, 128
          %v407 = vadd.s32 %v406, %v403
          %vm408 = vcmp.lt.s32.totalorder %v407, 256
          %v409 = vsel %vm408, 1, 0
          %vm410 = vcmp.eq.s32.totalorder %v409, 1
          %v411 = vsel %vm410, %v392, 0.0
          %v412 = vsel %vm410, %v393, 0.0
          %v413 = vsel %vm410, %v394, 0.0
          %v414 = vsel %vm410, %v395, 0.0
          %v415 = vld [vmem:[#allocation2] sm:$0xf]
          %v416 = vmul.f32 %v411, %v396
          %v417 = vmul.f32 %v412, %v397
          %v418 = vmul.f32 %v413, %v398
          %v419 = vmul.f32 %v414, %v399
          %v420 = vrot.slane %v416, 4
          %v421 = vadd.f32 %v416, %v420
          %v422 = vrot.slane %v421, 2
          %v423 = vadd.f32 %v421, %v422
          %v424 = vrot.slane %v423, 1
          %v425 = vadd.f32 %v423, %v424
          %v426 = vrot.slane %v417, 4
          %v427 = vadd.f32 %v417, %v426
          %v428 = vrot.slane %v427, 2
          %v429 = vadd.f32 %v427, %v428
          %v430 = vrot.slane %v429, 1
          %v431 = vadd.f32 %v429, %v430
          %v432 = vrot.slane %v418, 4
          %v433 = vadd.f32 %v418, %v432
          %v434 = vrot.slane %v433, 2
          %v435 = vadd.f32 %v433, %v434
          %v436 = vrot.slane %v435, 1
          %v437 = vadd.f32 %v435, %v436
          %v438 = vrot.slane %v419, 4
          %v439 = vadd.f32 %v419, %v438
          %v440 = vrot.slane %v439, 2
          %v441 = vadd.f32 %v439, %v440
          %v442 = vrot.slane %v441, 1
          %v443 = vadd.f32 %v441, %v442
          %vm448 = vcmask 1041409
          %v449 = vsel %vm448, %v431, %v425
          %vm450 = vcmask 1042434
          %v451 = vsel %vm450, %v437, %v449
          %vm452 = vcmask 1043459
          %v453 = vsel %vm452, %v443, %v451
          %v455 = vadd.f32 %v415, %v453
          %456 = vst [vmem:[#allocation2] sm:$0xf] %v455
          %v457 = vld [vmem:[#allocation3] sm:$0xf]
          %v458 = vadd.f32 %v411, %v396
          %v459 = vadd.f32 %v412, %v397
          %v460 = vadd.f32 %v413, %v398
          %v461 = vadd.f32 %v414, %v399
          %v462 = vrot.slane %v458, 4
          %v463 = vadd.f32 %v458, %v462
          %v464 = vrot.slane %v463, 2
          %v465 = vadd.f32 %v463, %v464
          %v466 = vrot.slane %v465, 1
          %v467 = vadd.f32 %v465, %v466
          %v468 = vrot.slane %v459, 4
          %v469 = vadd.f32 %v459, %v468
          %v470 = vrot.slane %v469, 2
          %v471 = vadd.f32 %v469, %v470
          %v472 = vrot.slane %v471, 1
          %v473 = vadd.f32 %v471, %v472
          %v474 = vrot.slane %v460, 4
          %v475 = vadd.f32 %v460, %v474
          %v476 = vrot.slane %v475, 2
          %v477 = vadd.f32 %v475, %v476
          %v478 = vrot.slane %v477, 1
          %v479 = vadd.f32 %v477, %v478
          %v480 = vrot.slane %v461, 4
          %v481 = vadd.f32 %v461, %v480
          %v482 = vrot.slane %v481, 2
          %v483 = vadd.f32 %v481, %v482
          %v484 = vrot.slane %v483, 1
          %v485 = vadd.f32 %v483, %v484
          %v490 = vsel %vm448, %v473, %v467
          %v491 = vsel %vm450, %v479, %v490
          %v492 = vsel %vm452, %v485, %v491
          %v494 = vadd.f32 %v457, %v492
          %495 = vst [vmem:[#allocation3] sm:$0xf] %v494
        $region48: #{tpu_custom_call.1} parent=27 // pred_fallthru
          _
        // Predicated region
        $region49: #{tpu_custom_call.1} parent=27 // pred_check
          %p496 = pneg %p237
        $region50: #{tpu_custom_call.1} parent=27 // pred_check_branch
          %498 = sbr.rel (%p496) target = $region52
        $region51: #{tpu_custom_call.1} parent=27 // pred_region
          %v499 = vld [vmem:[#allocation2] sm:$0xf]
          %vm500 = vcmask 1043456
          %v501 = vsel %vm500, %v499, 0.0
          %502 = vadd.xlane.f32.xlu0 %v501
          %v503 = vpop.xlane.xlu0 %502
          %v505 = vlaneseq
          %v506 = vand.u32 %v505, 127
          %v507 = vlaneseq
          %v508 = vshrl.u32 %v507, 7
          %v509 = vsub.s32 %v506, %v508
          %v510 = vrot.slane %v503, %v509
          %vm512 = vcmask 24576
          %513 = vst.msk [vmem:[%s234] sm:$0x1] %vm512, %v510
          %v514 = vld [vmem:[#allocation3] sm:$0xf]
          %v515 = vsel %vm500, %v514, 0.0
          %516 = vadd.xlane.f32.xlu0 %v515
          %v517 = vpop.xlane.xlu0 %516
          %v519 = vlaneseq
          %v520 = vshrl.u32 %v519, 7
          %v521 = vsub.s32 %v506, %v520
          %v522 = vrot.slane %v517, %v521
          %524 = vst.msk [vmem:[%s234 + $0x1] sm:$0x1] %vm512, %v522
        $region52: #{tpu_custom_call.1} parent=27 // pred_fallthru
          _
        %s525 = sand.u32 %s111, 1
        %s526 = scalar_lea.sflag [#allocation6], %s525
        %s527 = sand.u32 %s111, 1
        %s528 = smul.addr %s527, 2
        %s529 = scalar_lea.vmem [#allocation9], %s528
        // Predicated region
        $region53: #{tpu_custom_call.1} parent=27 // pred_check
          %p530 = pneg %p121
        $region54: #{tpu_custom_call.1} parent=27 // pred_check_branch
          %532 = sbr.rel (%p530) target = $region56
        $region55: #{tpu_custom_call.1} parent=27 // pred_region
          %s534 = ssub.s32 32, 32
          %535 = vsyncadd %s526, %s534
          %s536 = sadd.s32 %s28, %s27
          %s537 = smul.addr %s536, 32
          %s538 = scalar_lea.hbm %s2, %s537
          %s540 = sshll.u32 %s529, 4
          %s541 = int_to_ptr.vmem [resolvable:$true] %s540
          %543 = dma.vmem_to_hbm [thread:$0]  %s541, 32, %s538, %s526
        $region56: #{tpu_custom_call.1} parent=27 // pred_fallthru
          _
      $region28: #{tpu_custom_call.1} parent=5 // pred_fallthru
        _
      %p544 = scmp.le.s32.totalorder 2, %s17
      // Predicated region
      $region57: #{tpu_custom_call.1} parent=5 // pred_check
        %p545 = pneg %p544
      $region58: #{tpu_custom_call.1} parent=5 // pred_check_branch
        %547 = sbr.rel (%p545) target = $region60
      $region59: #{tpu_custom_call.1} parent=5 // pred_region
        %s548 = ssub.s32 %s17, 2
        // Predicated region
        $region61: #{tpu_custom_call.1} parent=59 // pred_check
          %p549 = pneg %p127
        $region62: #{tpu_custom_call.1} parent=59 // pred_check_branch
          %551 = sbr.rel (%p549) target = $region64
        $region63: #{tpu_custom_call.1} parent=59 // pred_region
          %s552 = sand.u32 %s112, 1
          %s553 = scalar_lea.sflag [#allocation6], %s552
          %s554 = sand.u32 %s112, 1
          %s555 = smul.addr %s554, 2
          %s556 = scalar_lea.vmem [#allocation9], %s555
          %557 = dma.done %s553, 32
        $region64: #{tpu_custom_call.1} parent=59 // pred_fallthru
          _
      $region60: #{tpu_custom_call.1} parent=5 // pred_fallthru
        _
    $region6: #{tpu_custom_call.1} parent=1 // loop_footer
      %s21 = sadd.s32 1, %s17
    $region7: #{tpu_custom_call.1} parent=1 // loop_footer_branch
      %16 = sbr.rel target = $region3
    $region8: #{tpu_custom_call.1} parent=1 // loop_exit
      _
    %558 = vsyncpa [#allocation5], 1
    %s559 = scalar_lea.sflag [#allocation5], 1
    %560 = vsyncpa %s559, 1
    %561 = vsyncpa [#allocation8], 1
    %s562 = scalar_lea.sflag [#allocation8], 1
    %563 = vsyncpa %s562, 1
    %564 = vsyncpa [#allocation6], 1
    %s565 = scalar_lea.sflag [#allocation6], 1
    %566 = vsyncpa %s565, 1

</llo_original>
